<compile_context>
chip_gen: v7x
topology: tpu7x:2x2x1
jax: 0.10.0
libtpu: 0.0.40
codegen_flags: <defaults>
</compile_context>

<pallas_src>
import jax
import jax.numpy as jnp
from jax.experimental import pallas as pl
from jax.experimental.pallas import tpu as pltpu

_LANE = 128
_VMEM_TARGET = 56 << 20  # keep the plan inside v7x's 64 MiB physical VMEM


def _round_up(x, m):
    return (x + m - 1) // m * m


def _cdiv(a, b):
    return -(-a // b)


def _vmem_bytes(tb, n_in, n_hid, out_pad, n_out):
    """Approximate VMEM footprint (padded layouts, default double-buffering)."""
    in_l = _round_up(n_in, _LANE)
    hid_l = _round_up(n_hid, _LANE)
    out_l = _round_up(n_out, _LANE)
    total = 0
    total += 2 * tb * in_l * 2                        # x tile (bf16), 2 buffers
    total += 2 * _round_up(n_in, 16) * hid_l * 2      # w1 (bf16), 2 buffers
    total += 2 * 8 * hid_l * 4                        # b1 (f32)
    total += 2 * _round_up(n_hid, 16) * out_pad * 2   # w2 padded (bf16)
    total += 2 * 8 * out_pad * 4                      # b2 padded (f32)
    total += 2 * tb * out_l * 4                       # out tile (f32), 2 buffers
    total += tb * hid_l * 4 + tb * out_pad * 4        # h / logits intermediates
    return total


def _mlp_leakyrelu_softmax_kernel(x_ref, w1_ref, b1_ref, w2_ref, b2_ref, o_ref):
    # Hidden linear on the MXU: bf16 x / bf16 w1, f32 accumulate; f32 bias add.
    h = jnp.dot(x_ref[...], w1_ref[...], preferred_element_type=jnp.float32)
    h = h + b1_ref[...]

    # Dropout(0.5) in eval mode -> identity.
    # LeakyReLU (default negative_slope = 0.01), in f32.
    h = jnp.where(h >= 0.0, h, 0.01 * h)

    # Output linear on the lane-padded columns: [TB, H] @ [H, Opad] + [1, Opad].
    # Padded bias columns are -1e9 (large finite, NOT -inf) so their exp underflows
    # to exactly 0 and the softmax over the real columns is unchanged.
    logits = jnp.dot(h.astype(jnp.bfloat16), w2_ref[...],
                     preferred_element_type=jnp.float32) + b2_ref[...]

    # Numerically stable softmax over the last (lane) axis, in f32.
    m = jnp.max(logits, axis=-1, keepdims=True)
    e = jnp.exp(logits - m)
    denom = jnp.sum(e, axis=-1, keepdims=True)
    # Exact reciprocal keeps tight tolerance vs the reference while moving the
    # divide off the VALU path.
    probs = e * pl.reciprocal(denom)

    # Store only the real output columns: narrow f32 HBM writeback instead of the
    # 128-wide padded slab.
    o_ref[...] = probs[:, : o_ref.shape[-1]].astype(o_ref.dtype)


def mlp_classifier_leakyrelu(x, w1, b1, w2, b2, *, block_b=512):
    """Pallas forward pass.

    x : [B, num_input]                float32 (cast to bf16 internally)
    w1: [num_input, num_hidden]       (transposed vs. PyTorch's [out, in])
    b1: [num_hidden] or [1, num_hidden]
    w2: [num_hidden, num_output]
    b2: [num_output] or [1, num_output]
    returns: [B, num_output] softmax probabilities (float32)
    """
    x = jnp.asarray(x, jnp.float32)
    w1 = jnp.asarray(w1, jnp.float32)
    w2 = jnp.asarray(w2, jnp.float32)
    b1 = jnp.asarray(b1, jnp.float32).reshape(1, -1)
    b2 = jnp.asarray(b2, jnp.float32).reshape(1, -1)

    B, num_input = x.shape
    num_hidden = w1.shape[1]
    num_output = w2.shape[1]

    # --- bf16 MXU operands (halve HBM/VMEM traffic); biases stay f32. ---
    x_bf = x.astype(jnp.bfloat16)
    w1_bf = w1.astype(jnp.bfloat16)

    # --- Lane-padded second-layer weights for the in-VMEM softmax compute. ---
    out_pad = _round_up(max(num_output, _LANE), _LANE)
    w2_p = (jnp.zeros((num_hidden, out_pad), jnp.float32)
            .at[:, :num_output].set(w2).astype(jnp.bfloat16))
    b2_p = jnp.full((1, out_pad), -1e9, jnp.float32).at[:, :num_output].set(b2)

    # --- Batch tiling: minimize padding waste, keep the v7x pipeline fed. ---
    n_blocks = max(1, _cdiv(B, block_b))
    # Prefer >= 8 grid steps (>= 4 per TensorCore after megacore sharding) when B
    # allows, without shrinking tiles below 64 rows to get there.
    n_blocks = max(n_blocks, min(8, _cdiv(B, 64)))
    tb = _round_up(_cdiv(B, n_blocks), 8)

    # --- Explicit VMEM budget: cap tb so the footprint fits v7x's 64 MiB. ---
    while tb > 8 and _vmem_bytes(tb, num_input, num_hidden, out_pad, num_output) > _VMEM_TARGET:
        tb = max(8, _round_up(tb // 2, 8))
    needed = _vmem_bytes(tb, num_input, num_hidden, out_pad, num_output)
    vmem_limit = int(min(max(needed + (4 << 20), 16 << 20), 100 << 20))

    b_pad = _round_up(B, tb)
    if b_pad != B:
        x_bf = jnp.pad(x_bf, ((0, b_pad - B), (0, 0)))
    grid = (b_pad // tb,)

    out = pl.pallas_call(
        _mlp_leakyrelu_softmax_kernel,
        out_shape=jax.ShapeDtypeStruct((b_pad, num_output), jnp.float32),
        grid=grid,
        in_specs=[
            # Activations: blocked along the batch axis (double-buffered by Pallas).
            pl.BlockSpec((tb, num_input), lambda i: (i, 0)),
            # Weights / biases: same block every grid step -> VMEM-resident, no re-DMA.
            pl.BlockSpec((num_input, num_hidden), lambda i: (0, 0)),
            pl.BlockSpec((1, num_hidden), lambda i: (0, 0)),
            pl.BlockSpec((num_hidden, out_pad), lambda i: (0, 0)),
            pl.BlockSpec((1, out_pad), lambda i: (0, 0)),
        ],
        # Narrow output block: full (un-padded) last dim is legal and avoids the
        # 32x-inflated padded HBM writeback for small num_output.
        out_specs=pl.BlockSpec((tb, num_output), lambda i: (i, 0)),
        compiler_params=pltpu.CompilerParams(
            dimension_semantics=("parallel",),  # megacore sharding on v7x
            vmem_limit_bytes=vmem_limit,
        ),
    )(x_bf, w1_bf, b1, w2_p, b2_p)

    # Strip batch padding outside the kernel.
    return out[:B, :]


def _reference_bf16(x, w1, b1, w2, b2):
    """Pure-JAX reference mirroring the kernel's dtype policy (eval-mode dropout)."""
    xb = x.astype(jnp.bfloat16)
    w1b = w1.astype(jnp.bfloat16)
    w2b = w2.astype(jnp.bfloat16)
    h = jnp.dot(xb, w1b, preferred_element_type=jnp.float32) + b1.reshape(1, -1)
    h = jnp.where(h >= 0.0, h, 0.01 * h)
    logits = jnp.dot(h.astype(jnp.bfloat16), w2b,
                     preferred_element_type=jnp.float32) + b2.reshape(1, -1)
    return jax.nn.softmax(logits, axis=1)


def _reference_f32(x, w1, b1, w2, b2):
    """Full-f32 reference (module semantics sanity check)."""
    h = x @ w1 + b1.reshape(1, -1)
    h = jnp.where(h >= 0.0, h, 0.01 * h)
    logits = h @ w2 + b2.reshape(1, -1)
    return jax.nn.softmax(logits, axis=1)


if __name__ == "__main__":
    # Small shapes consistent with the module's forward: x is [batch, num_input].
    batch, num_input, num_hidden, num_output = 16, 32, 64, 4

    key = jax.random.PRNGKey(0)
    kx, kw1, kb1, kw2, kb2 = jax.random.split(key, 5)

    x = jax.random.normal(kx, (batch, num_input), dtype=jnp.float32)

    # Deterministic synthetic parameters (shapes from nn.Linear in __init__),
    # stored as [in, out] so the kernel does x @ W directly.
    w1 = jax.random.normal(kw1, (num_input, num_hidden), dtype=jnp.float32) * 0.1
    b1 = jax.random.normal(kb1, (1, num_hidden), dtype=jnp.float32) * 0.1
    w2 = jax.random.normal(kw2, (num_hidden, num_output), dtype=jnp.float32) * 0.1
    b2 = jax.random.normal(kb2, (1, num_output), dtype=jnp.float32) * 0.1

    # block_b=8 -> 2 batch blocks even at this toy size, exercising the pipelined
    # batch grid and (on v7x) both TensorCores.
    out = mlp_classifier_leakyrelu(x, w1, b1, w2, b2, block_b=8)
    out = jax.block_until_ready(out)

    ref_bf = _reference_bf16(x, w1, b1, w2, b2)
    ref_f32 = _reference_f32(x, w1, b1, w2, b2)

    assert out.shape == (batch, num_output), out.shape
    # Tight tolerance vs the dtype-matched reference.
    assert jnp.allclose(out, ref_bf, atol=2e-5, rtol=2e-5), "mismatch vs bf16 reference"
    # Loose tolerance vs the pure-f32 reference (bf16 matmul rounding).
    assert jnp.allclose(out, ref_f32, atol=2e-2, rtol=2e-2), "mismatch vs f32 reference"
    # Rows of a softmax must sum to 1.
    assert jnp.allclose(jnp.sum(out, axis=1), 1.0, atol=1e-5)

    print("KERNEL_OK")
</pallas_src>

<mosaic_0001>
module attributes {stable_mosaic.version = 11 : i64} {
  func.func @_mlp_leakyrelu_softmax_kernel(%arg0: i32, %arg1: memref<8x32xbf16, #tpu.memory_space<vmem>>, %arg2: memref<32x64xbf16, #tpu.memory_space<vmem>>, %arg3: memref<1x64xf32, #tpu.memory_space<vmem>>, %arg4: memref<64x128xbf16, #tpu.memory_space<vmem>>, %arg5: memref<1x128xf32, #tpu.memory_space<vmem>>, %arg6: memref<8x4xf32, #tpu.memory_space<vmem>>) attributes {dimension_semantics = [#tpu.dimension_semantics<parallel>], iteration_bounds = array<i64: 2>, scalar_prefetch = 0 : i64, scratch_operands = 0 : i64, tpu.core_type = #tpu.core_type<tc>, window_params = [{transform_indices = @transform_0, window_bounds = array<i64: 8, 32>}, {pipeline_mode = #tpu.pipeline_mode<synchronous>, transform_indices = @transform_1, window_bounds = array<i64: 32, 64>}, {pipeline_mode = #tpu.pipeline_mode<synchronous>, transform_indices = @transform_2, window_bounds = array<i64: 1, 64>}, {pipeline_mode = #tpu.pipeline_mode<synchronous>, transform_indices = @transform_3, window_bounds = array<i64: 64, 128>}, {pipeline_mode = #tpu.pipeline_mode<synchronous>, transform_indices = @transform_4, window_bounds = array<i64: 1, 128>}, {transform_indices = @transform_5, window_bounds = array<i64: 8, 4>}]} {
    %c0 = arith.constant 0 : index
    %c0_0 = arith.constant 0 : index
    %0 = vector.load %arg1[%c0, %c0_0] : memref<8x32xbf16, #tpu.memory_space<vmem>>, vector<8x32xbf16>
    %c0_1 = arith.constant 0 : index
    %c0_2 = arith.constant 0 : index
    %1 = vector.load %arg2[%c0_1, %c0_2] : memref<32x64xbf16, #tpu.memory_space<vmem>>, vector<32x64xbf16>
    %cst = arith.constant dense<0.000000e+00> : vector<8x64xf32>
    %2 = tpu.matmul %0, %1, %cst {dimension_numbers = #tpu.dot_dimension_numbers<[1], [0], [0], [1], [0, 0, 1, 1], [], []>} : vector<8x32xbf16>, vector<32x64xbf16>, vector<8x64xf32> -> vector<8x64xf32>
    %c0_3 = arith.constant 0 : index
    %c0_4 = arith.constant 0 : index
    %3 = vector.load %arg3[%c0_3, %c0_4] : memref<1x64xf32, #tpu.memory_space<vmem>>, vector<1x64xf32>
    %4 = vector.broadcast %3 : vector<1x64xf32> to vector<8x64xf32>
    %5 = arith.addf %2, %4 : vector<8x64xf32>
    %cst_5 = arith.constant 0.000000e+00 : f32
    %6 = vector.broadcast %cst_5 : f32 to vector<8x64xf32>
    %7 = arith.cmpf oge, %5, %6 : vector<8x64xf32>
    %cst_6 = arith.constant 0.00999999977 : f32
    %8 = vector.broadcast %cst_6 : f32 to vector<8x64xf32>
    %9 = arith.mulf %8, %5 : vector<8x64xf32>
    %10 = arith.select %7, %5, %9 : vector<8x64xi1>, vector<8x64xf32>
    %11 = arith.truncf %10 : vector<8x64xf32> to vector<8x64xbf16>
    %c0_7 = arith.constant 0 : index
    %c0_8 = arith.constant 0 : index
    %12 = vector.load %arg4[%c0_7, %c0_8] : memref<64x128xbf16, #tpu.memory_space<vmem>>, vector<64x128xbf16>
    %cst_9 = arith.constant dense<0.000000e+00> : vector<8x128xf32>
    %13 = tpu.matmul %11, %12, %cst_9 {dimension_numbers = #tpu.dot_dimension_numbers<[1], [0], [0], [1], [0, 0, 1, 1], [], []>} : vector<8x64xbf16>, vector<64x128xbf16>, vector<8x128xf32> -> vector<8x128xf32>
    %c0_10 = arith.constant 0 : index
    %c0_11 = arith.constant 0 : index
    %14 = vector.load %arg5[%c0_10, %c0_11] : memref<1x128xf32, #tpu.memory_space<vmem>>, vector<1x128xf32>
    %15 = vector.broadcast %14 : vector<1x128xf32> to vector<8x128xf32>
    %16 = arith.addf %13, %15 : vector<8x128xf32>
    %cst_12 = arith.constant dense<0xFF800000> : vector<8xf32>
    %17 = vector.multi_reduction <maximumf>, %16, %cst_12 [1] : vector<8x128xf32> to vector<8xf32>
    %18 = vector.shape_cast %17 : vector<8xf32> to vector<8x1xf32>
    %19 = vector.broadcast %18 : vector<8x1xf32> to vector<8x128xf32>
    %20 = arith.subf %16, %19 : vector<8x128xf32>
    %21 = math.exp %20 : vector<8x128xf32>
    %cst_13 = arith.constant dense<0.000000e+00> : vector<8xf32>
    %22 = vector.multi_reduction <add>, %21, %cst_13 [1] : vector<8x128xf32> to vector<8xf32>
    %23 = vector.shape_cast %22 : vector<8xf32> to vector<8x1xf32>
    %24 = tpu.reciprocal %23 : vector<8x1xf32> -> vector<8x1xf32>
    %25 = vector.broadcast %24 : vector<8x1xf32> to vector<8x128xf32>
    %26 = arith.mulf %21, %25 : vector<8x128xf32>
    %27 = vector.extract_strided_slice %26 {offsets = [0, 0], sizes = [8, 4], strides = [1, 1]} : vector<8x128xf32> to vector<8x4xf32>
    %c0_14 = arith.constant 0 : index
    %c0_15 = arith.constant 0 : index
    %28 = vector.load %arg6[%c0_14, %c0_15] : memref<8x4xf32, #tpu.memory_space<vmem>>, vector<8x4xf32>
    tpu.vector_store %arg6[%c0_14, %c0_15], %27 {strides = array<i32>} : memref<8x4xf32, #tpu.memory_space<vmem>>, vector<8x4xf32>,
    return
  }
  func.func @transform_0(%arg0: i32) -> (i32, i32) {
    %c0_i32 = arith.constant 0 : i32
    %c0_i32_0 = arith.constant 0 : i32
    return %arg0, %c0_i32 : i32, i32
  }
  func.func @transform_1(%arg0: i32) -> (i32, i32) {
    %c0_i32 = arith.constant 0 : i32
    %c0_i32_0 = arith.constant 0 : i32
    %c0_i32_1 = arith.constant 0 : i32
    return %c0_i32, %c0_i32_0 : i32, i32
  }
  func.func @transform_2(%arg0: i32) -> (i32, i32) {
    %c0_i32 = arith.constant 0 : i32
    %c0_i32_0 = arith.constant 0 : i32
    %c0_i32_1 = arith.constant 0 : i32
    return %c0_i32, %c0_i32_0 : i32, i32
  }
  func.func @transform_3(%arg0: i32) -> (i32, i32) {
    %c0_i32 = arith.constant 0 : i32
    %c0_i32_0 = arith.constant 0 : i32
    %c0_i32_1 = arith.constant 0 : i32
    return %c0_i32, %c0_i32_0 : i32, i32
  }
  func.func @transform_4(%arg0: i32) -> (i32, i32) {
    %c0_i32 = arith.constant 0 : i32
    %c0_i32_0 = arith.constant 0 : i32
    %c0_i32_1 = arith.constant 0 : i32
    return %c0_i32, %c0_i32_0 : i32, i32
  }
  func.func @transform_5(%arg0: i32) -> (i32, i32) {
    %c0_i32 = arith.constant 0 : i32
    %c0_i32_0 = arith.constant 0 : i32
    return %arg0, %c0_i32 : i32, i32
  }
}

</mosaic_0001>

<llo_original>
// kernel: tpu_custom_call.1
$region0: #{tpu_custom_call.1}
  #allocation0 [shape = 'u32[]', space=smem, size = 0x4, offset = 0x4, fixed_abs, tag = 'smem constant byte address 0x4 - core index']
  #allocation1 [shape = 'u32[144,128]{1,0:T(1,128)}', space=vmem, size = 0x12000, scoped, tag = 'internal scratch']
  %s0 = inlined_call_operand.hbm [shape: bf16[16,32], index: 0, kind: input, shape index: {}]
  %s1 = inlined_call_operand.hbm [shape: bf16[32,64], index: 1, kind: input, shape index: {}]
  %s2 = inlined_call_operand.vmem [shape: f32[1,64], index: 2, kind: input, shape index: {}]
  %s3 = inlined_call_operand.hbm [shape: bf16[64,128], index: 3, kind: input, shape index: {}]
  %s4 = inlined_call_operand.vmem [shape: f32[1,128], index: 4, kind: input, shape index: {}]
  %s5 = inlined_call_operand.vmem [shape: f32[16,4], index: 5, kind: output, shape index: {}]
  %s6 = sld [smem:[#allocation0]]
  $region65: #{tpu_custom_call.1} parent=0
    _
  %s8 = ssub.s32 1, %s6
  %s9 = scalar_select 0, %s8, %s6
  $region1: #{tpu_custom_call.1} parent=0
    #allocation2 [shape = 'u8[4096]{0}', space=vmem, size = 0x1000, scoped, tag = 'input window, operand 0']
    #allocation3 [shape = 's32[2]{0}', space=sflag, size = 0x8, scoped, tag = 'scoped memory for tpu_custom_call.1']
    #allocation4 [shape = 'u8[8192]{0}', space=vmem, size = 0x2000, scoped, tag = 'input window, operand 1, single buffered']
    #allocation5 [shape = 's32[1]{0}', space=sflag, size = 0x4, scoped, tag = 'scoped memory for tpu_custom_call.1']
    #allocation6 [shape = 'u8[16384]{0}', space=vmem, size = 0x4000, scoped, tag = 'input window, operand 3, single buffered']
    %10 = vsyncpa [#allocation3], 0
    %s11 = scalar_lea.sflag [#allocation3], 1
    %12 = vsyncpa %s11, 0
    %13 = vsyncpa [#allocation5], 0
    loop: start=0, step=1, limit=4
    $region2: #{tpu_custom_call.1} parent=1 // loop_pre_header
      _
    $region3: #{tpu_custom_call.1} parent=1 // loop_header
      %s15 = sphi 0, %s19
      %p16 = scmp.ge.s32.totalorder %s15, 4
      %s25 = sphi 0, %s27
      %s28 = sphi 0, %s25
      %s29 = sphi 0, %s28
      %s45 = sphi 0, %s29
      %s49 = sphi 0, %s49
      %s51 = sphi 0, %s49
      %s52 = sphi 0, %s51
      %s66 = sphi 0, %s52
      %s70 = sphi 0, %s70
      %s72 = sphi 0, %s70
      %s73 = sphi 0, %s72
      %s87 = sphi 0, %s73
      %s91 = sphi 0, %s91
      %s93 = sphi 0, %s91
      %s94 = sphi 0, %s93
      %s108 = sphi 0, %s94
      %s112 = sphi 0, %s112
      %s114 = sphi 0, %s112
      %s115 = sphi 0, %s114
      %s129 = sphi 0, %s115
      %s135 = sphi 0, %s137
      %s138 = sphi 0, %s135
      %s139 = sphi 0, %s138
      %s155 = sphi 0, %s139
    $region4: #{tpu_custom_call.1} parent=1 // loop_header_branch
      %18 = sbr.rel (%p16) target = $region8
    $region5: #{tpu_custom_call.1} parent=1 // loop_body
      %s20 = ssub.s32 %s15, 1
      %s21 = ssub.s32 %s15, 2
      %s22 = sadd.s32 %s15, 1
      %s23 = ssub.s32 %s15, %s22
      %p24 = scmp.eq.s32.totalorder %s23, 0
      %s26 = sadd.s32 %s25, 1
      %s27 = scalar_select %p24, %s25, %s26
      %p30 = pneg %p24
      %p31 = scmp.eq.s32.totalorder %s15, 1
      %p32 = por %p30, %p31
      %p33 = scmp.ne.s32.totalorder %s25, %s28
      %p34 = scmp.eq.s32.totalorder %s15, 0
      %p35 = por %p33, %p34
      %p36 = scmp.ne.s32.totalorder %s25, %s28
      %p37 = scmp.eq.s32.totalorder %s20, 1
      %p38 = por %p36, %p37
      %p39 = scmp.ne.s32.totalorder %s28, %s29
      %p40 = scmp.eq.s32.totalorder %s20, 0
      %p41 = por %p39, %p40
      %p42 = scmp.ne.s32.totalorder %s28, %s29
      %p43 = scmp.eq.s32.totalorder %s21, 1
      %p44 = por %p42, %p43
      %p46 = scmp.ne.s32.totalorder %s29, %s45
      %p47 = scmp.eq.s32.totalorder %s21, 0
      %p48 = por %p46, %p47
      %s50 = sadd.s32 %s49, 1
      %p53 = scmp.eq.s32.totalorder %s15, 1
      %p54 = scmp.ne.s32.totalorder %s49, %s51
      %p55 = scmp.eq.s32.totalorder %s15, 0
      %p56 = por %p54, %p55
      %p57 = scmp.ne.s32.totalorder %s49, %s51
      %p58 = scmp.eq.s32.totalorder %s20, 1
      %p59 = por %p57, %p58
      %p60 = scmp.ne.s32.totalorder %s51, %s52
      %p61 = scmp.eq.s32.totalorder %s20, 0
      %p62 = por %p60, %p61
      %p63 = scmp.ne.s32.totalorder %s51, %s52
      %p64 = scmp.eq.s32.totalorder %s21, 1
      %p65 = por %p63, %p64
      %p67 = scmp.ne.s32.totalorder %s52, %s66
      %p68 = scmp.eq.s32.totalorder %s21, 0
      %p69 = por %p67, %p68
      %s71 = sadd.s32 %s70, 1
      %p74 = scmp.eq.s32.totalorder %s15, 1
      %p75 = scmp.ne.s32.totalorder %s70, %s72
      %p76 = scmp.eq.s32.totalorder %s15, 0
      %p77 = por %p75, %p76
      %p78 = scmp.ne.s32.totalorder %s70, %s72
      %p79 = scmp.eq.s32.totalorder %s20, 1
      %p80 = por %p78, %p79
      %p81 = scmp.ne.s32.totalorder %s72, %s73
      %p82 = scmp.eq.s32.totalorder %s20, 0
      %p83 = por %p81, %p82
      %p84 = scmp.ne.s32.totalorder %s72, %s73
      %p85 = scmp.eq.s32.totalorder %s21, 1
      %p86 = por %p84, %p85
      %p88 = scmp.ne.s32.totalorder %s73, %s87
      %p89 = scmp.eq.s32.totalorder %s21, 0
      %p90 = por %p88, %p89
      %s92 = sadd.s32 %s91, 1
      %p95 = scmp.eq.s32.totalorder %s15, 1
      %p96 = scmp.ne.s32.totalorder %s91, %s93
      %p97 = scmp.eq.s32.totalorder %s15, 0
      %p98 = por %p96, %p97
      %p99 = scmp.ne.s32.totalorder %s91, %s93
      %p100 = scmp.eq.s32.totalorder %s20, 1
      %p101 = por %p99, %p100
      %p102 = scmp.ne.s32.totalorder %s93, %s94
      %p103 = scmp.eq.s32.totalorder %s20, 0
      %p104 = por %p102, %p103
      %p105 = scmp.ne.s32.totalorder %s93, %s94
      %p106 = scmp.eq.s32.totalorder %s21, 1
      %p107 = por %p105, %p106
      %p109 = scmp.ne.s32.totalorder %s94, %s108
      %p110 = scmp.eq.s32.totalorder %s21, 0
      %p111 = por %p109, %p110
      %s113 = sadd.s32 %s112, 1
      %p116 = scmp.eq.s32.totalorder %s15, 1
      %p117 = scmp.ne.s32.totalorder %s112, %s114
      %p118 = scmp.eq.s32.totalorder %s15, 0
      %p119 = por %p117, %p118
      %p120 = scmp.ne.s32.totalorder %s112, %s114
      %p121 = scmp.eq.s32.totalorder %s20, 1
      %p122 = por %p120, %p121
      %p123 = scmp.ne.s32.totalorder %s114, %s115
      %p124 = scmp.eq.s32.totalorder %s20, 0
      %p125 = por %p123, %p124
      %p126 = scmp.ne.s32.totalorder %s114, %s115
      %p127 = scmp.eq.s32.totalorder %s21, 1
      %p128 = por %p126, %p127
      %p130 = scmp.ne.s32.totalorder %s115, %s129
      %p131 = scmp.eq.s32.totalorder %s21, 0
      %p132 = por %p130, %p131
      %s133 = ssub.s32 %s15, %s22
      %p134 = scmp.eq.s32.totalorder %s133, 0
      %s136 = sadd.s32 %s135, 1
      %s137 = scalar_select %p134, %s135, %s136
      %p140 = pneg %p134
      %p141 = scmp.eq.s32.totalorder %s15, 1
      %p142 = por %p140, %p141
      %p143 = scmp.ne.s32.totalorder %s135, %s138
      %p144 = scmp.eq.s32.totalorder %s15, 0
      %p145 = por %p143, %p144
      %p146 = scmp.ne.s32.totalorder %s135, %s138
      %p147 = scmp.eq.s32.totalorder %s20, 1
      %p148 = por %p146, %p147
      %p149 = scmp.ne.s32.totalorder %s138, %s139
      %p150 = scmp.eq.s32.totalorder %s20, 0
      %p151 = por %p149, %p150
      %p152 = scmp.ne.s32.totalorder %s138, %s139
      %p153 = scmp.eq.s32.totalorder %s21, 1
      %p154 = por %p152, %p153
      %p156 = scmp.ne.s32.totalorder %s139, %s155
      %p157 = scmp.eq.s32.totalorder %s21, 0
      %p158 = por %p156, %p157
      %p159 = scmp.le.s32.totalorder 1, %s15
      %p160 = scmp.lt.s32.totalorder %s15, 3
      %p161 = pnand %p159, %p160
      %p162 = pneg %p161
      // Predicated region
      $region9: #{tpu_custom_call.1} parent=5 // pred_check
        _
      $region10: #{tpu_custom_call.1} parent=5 // pred_check_branch
        %164 = sbr.rel (%p161) target = $region12
      $region11: #{tpu_custom_call.1} parent=5 // pred_region
        %s165 = ssub.s32 %s15, 1
        // Predicated region
        $region13: #{tpu_custom_call.1} parent=11 // pred_check
          %p166 = pneg %p62
        $region14: #{tpu_custom_call.1} parent=11 // pred_check_branch
          %168 = sbr.rel (%p166) target = $region16
        $region15: #{tpu_custom_call.1} parent=11 // pred_region
          %s170 = ssub.s32 256, 256
          %171 = vsyncadd [#allocation5], %s170
          %s172 = sshll.u32 [#allocation4], 4
          %s173 = int_to_ptr.vmem [resolvable:$true] %s172
          %178 = dma.hbm_to_vmem [thread:$0]  %s1, 256, %s173, [#allocation5], 64, 64, 4
        $region16: #{tpu_custom_call.1} parent=11 // pred_fallthru
          _
        // Predicated region
        $region17: #{tpu_custom_call.1} parent=11 // pred_check
          %p179 = pneg %p83
        $region18: #{tpu_custom_call.1} parent=11 // pred_check_branch
          %181 = sbr.rel (%p179) target = $region20
        $region19: #{tpu_custom_call.1} parent=11 // pred_region
          _
        $region20: #{tpu_custom_call.1} parent=11 // pred_fallthru
          _
        // Predicated region
        $region21: #{tpu_custom_call.1} parent=11 // pred_check
          %p182 = pneg %p104
        $region22: #{tpu_custom_call.1} parent=11 // pred_check_branch
          %184 = sbr.rel (%p182) target = $region24
        $region23: #{tpu_custom_call.1} parent=11 // pred_region
          %s186 = ssub.s32 512, 512
          %187 = vsyncadd [#allocation5], %s186
          %s188 = sshll.u32 [#allocation6], 4
          %s189 = int_to_ptr.vmem [resolvable:$true] %s188
          %194 = dma.hbm_to_vmem [thread:$0]  %s3, 512, %s189, [#allocation5], 64, 64, 4
        $region24: #{tpu_custom_call.1} parent=11 // pred_fallthru
          _
        // Predicated region
        $region25: #{tpu_custom_call.1} parent=11 // pred_check
          %p195 = pneg %p125
        $region26: #{tpu_custom_call.1} parent=11 // pred_check_branch
          %197 = sbr.rel (%p195) target = $region28
        $region27: #{tpu_custom_call.1} parent=11 // pred_region
          _
        $region28: #{tpu_custom_call.1} parent=11 // pred_fallthru
          _
      $region12: #{tpu_custom_call.1} parent=5 // pred_fallthru
        _
      %p198 = scmp.lt.s32.totalorder %s15, 2
      // Predicated region
      $region29: #{tpu_custom_call.1} parent=5 // pred_check
        %p199 = pneg %p198
      $region30: #{tpu_custom_call.1} parent=5 // pred_check_branch
        %201 = sbr.rel (%p199) target = $region32
      $region31: #{tpu_custom_call.1} parent=5 // pred_region
        // Predicated region
        $region33: #{tpu_custom_call.1} parent=31 // pred_check
          %p202 = pneg %p35
        $region34: #{tpu_custom_call.1} parent=31 // pred_check_branch
          %204 = sbr.rel (%p202) target = $region36
        $region35: #{tpu_custom_call.1} parent=31 // pred_region
          %s205 = sand.u32 %s25, 1
          %s206 = scalar_lea.sflag [#allocation3], %s205
          %s207 = sand.u32 %s25, 1
          %s208 = smul.addr %s207, 4
          %s209 = scalar_lea.vmem [#allocation2], %s208
          %s211 = ssub.s32 64, 64
          %212 = vsyncadd %s206, %s211
          %s213 = smul.addr %s15, 64
          %s214 = scalar_lea.hbm %s0, %s213
          %s216 = sshll.u32 %s209, 4
          %s217 = int_to_ptr.vmem [resolvable:$true] %s216
          %219 = dma.hbm_to_vmem [thread:$0]  %s214, 64, %s217, %s206
        $region36: #{tpu_custom_call.1} parent=31 // pred_fallthru
          _
      $region32: #{tpu_custom_call.1} parent=5 // pred_fallthru
        _
      %p220 = scmp.le.s32.totalorder 1, %s15
      %p221 = scmp.lt.s32.totalorder %s15, 3
      %p222 = pnand %p220, %p221
      %p223 = pneg %p222
      // Predicated region
      $region37: #{tpu_custom_call.1} parent=5 // pred_check
        _
      $region38: #{tpu_custom_call.1} parent=5 // pred_check_branch
        %225 = sbr.rel (%p222) target = $region40
      $region39: #{tpu_custom_call.1} parent=5 // pred_region
        %s226 = ssub.s32 %s15, 1
        %s227 = sand.u32 %s28, 1
        %s228 = scalar_lea.sflag [#allocation3], %s227
        %s229 = sand.u32 %s28, 1
        %s230 = smul.addr %s229, 4
        %s231 = scalar_lea.vmem [#allocation2], %s230
        // Predicated region
        $region41: #{tpu_custom_call.1} parent=39 // pred_check
          %p232 = pneg %p41
        $region42: #{tpu_custom_call.1} parent=39 // pred_check_branch
          %234 = sbr.rel (%p232) target = $region44
        $region43: #{tpu_custom_call.1} parent=39 // pred_region
          %235 = dma.done %s228, 64
        $region44: #{tpu_custom_call.1} parent=39 // pred_fallthru
          _
        // Predicated region
        $region45: #{tpu_custom_call.1} parent=39 // pred_check
          %p236 = pneg %p62
        $region46: #{tpu_custom_call.1} parent=39 // pred_check_branch
          %238 = sbr.rel (%p236) target = $region48
        $region47: #{tpu_custom_call.1} parent=39 // pred_region
          %239 = dma.done [#allocation5], 256
        $region48: #{tpu_custom_call.1} parent=39 // pred_fallthru
          _
        // Predicated region
        $region49: #{tpu_custom_call.1} parent=39 // pred_check
          %p240 = pneg %p104
        $region50: #{tpu_custom_call.1} parent=39 // pred_check_branch
          %242 = sbr.rel (%p240) target = $region52
        $region51: #{tpu_custom_call.1} parent=39 // pred_region
          %243 = dma.done [#allocation5], 512
        $region52: #{tpu_custom_call.1} parent=39 // pred_fallthru
          _
        %s244 = sand.u32 %s28, 1
        %s245 = scalar_lea.sflag [#allocation3], %s244
        %s246 = sand.u32 %s28, 1
        %s247 = smul.addr %s246, 4
        %s248 = scalar_lea.vmem [#allocation2], %s247
        %p249 = pneg %p41
        %p250 = pneg %p38
        %p251 = pneg %p62
        %p252 = pneg %p59
        %p253 = pneg %p83
        %p254 = pneg %p80
        %p255 = pneg %p104
        %p256 = pneg %p101
        %p257 = pneg %p125
        %p258 = pneg %p122
        %p259 = pneg %p151
        %p260 = pneg %p148
        %p261 = scmp.lt.s32.totalorder %s20, 1
        %s262 = scalar_select %p261, %s20, 1
        %s263 = smul.addr %s262, 8
        %s264 = scalar_lea.vmem %s5, %s263
        %p265 = scmp.lt.s32.totalorder %s20, 1
        %s266 = scalar_select %p265, %s20, 1
        %s267 = smul.addr %s266, 8
        %s268 = scalar_lea.vmem %s5, %s267
        %v270 = vld [vmem:[%s231] sm:$0xf]
        %v271 = vld [vmem:[#allocation4] sm:$0xf]
        %v272 = vld [vmem:[#allocation4 + $0x4] sm:$0xf]
        %v273 = vld [vmem:[#allocation4 + $0x8] sm:$0xf]
        %v274 = vld [vmem:[#allocation4 + $0xc] sm:$0xf]
        %v275 = vld [vmem:[%s2] sm:$0x1]
        %v277 = vlaneseq
        %v278 = vshrl.u32 %v277, 7
        %v279 = vsub.s32 0, %v278
        %v280 = vrot.slane %v275, %v279
        %v286 = vunpack.c.l.b16 %v271
        %v287 = vunpack.c.l.b16 %v272
        %v288 = vunpack.c.l.b16 %v273
        %v289 = vunpack.c.l.b16 %v274
        %v290 = vpack.c.b16 %v287, %v286
        %v291 = vpack.c.b16 %v289, %v288
        %vm294 = vcmask 261120
        %v296 = vsel %vm294, %v270, 0
        %298 = vmatprep.subr.bf16.mxu0 0
        %299 = vmatpush1.bf16.msra.mxu0 %v290
        %300 = vmatprep.subr.bf16.mxu0 0
        %301 = vmatpush1.bf16.msra.mxu0 %v291
        %302 = vmatprep.subr.bf16.mxu0 0
        %303 = vmatpush1.bf16.msra.mxu0 0
        %304 = vmatprep.subr.bf16.mxu0 0
        %305 = vmatpush1.bf16.msra.mxu0 0
        %306 = vmatprep.subr.bf16.mxu0 0
        %307 = vmatpush1.bf16.msra.mxu0 0
        %308 = vmatprep.subr.bf16.mxu0 0
        %309 = vmatpush1.bf16.msra.mxu0 0
        %310 = vmatprep.subr.bf16.mxu0 0
        %311 = vmatpush1.bf16.msra.mxu0 0
        %312 = vmatprep.subr.bf16.mxu0 0
        %313 = vmatpush1.bf16.msra.mxu0 0
        %314 = vmatprep.subr.bf16.mxu0 0
        %315 = vmatpush1.bf16.msra.mxu0 0
        %316 = vmatprep.subr.bf16.mxu0 0
        %317 = vmatpush1.bf16.msra.mxu0 0
        %318 = vmatprep.subr.bf16.mxu0 0
        %319 = vmatpush1.bf16.msra.mxu0 0
        %320 = vmatprep.subr.bf16.mxu0 0
        %321 = vmatpush1.bf16.msra.mxu0 0
        %322 = vmatprep.subr.bf16.mxu0 0
        %323 = vmatpush1.bf16.msra.mxu0 0
        %324 = vmatprep.subr.bf16.mxu0 0
        %325 = vmatpush1.bf16.msra.mxu0 0
        %326 = vmatprep.subr.bf16.mxu0 0
        %327 = vmatpush1.bf16.msra.mxu0 0
        %328 = vmatprep.subr.bf16.mxu0 0
        %329 = vmatpush1.bf16.msra.mxu0 0
        %330 = vmatprep.mubr.bf16.mxu0 0
        %331 = vmatmul.mubr.bf16.gmra.mrb[0].mxu0 %v296
        %v332 = vpop.f32.mrb[0].mxu0
        %v333 = vadd.f32 %v280, %v332
        %v334 = vpop.f32.mrb[0].mxu0
        %v335 = vpop.f32.mrb[0].mxu0
        %v336 = vpop.f32.mrb[0].mxu0
        %337 = vdwg.mxu0
        %vm338 = vcmp.ge.f32.partialorder %v333, 0.0
        %v339 = vmul.f32 %v333, 0.01
        %v340 = vsel %vm338, %v333, %v339
        %v341 = vpack.c.bf16 %v340, %v340
        %v342 = vld [vmem:[#allocation6] sm:$0xf]
        %v343 = vld [vmem:[#allocation6 + $0x4] sm:$0xf]
        %v344 = vld [vmem:[#allocation6 + $0x8] sm:$0xf]
        %v345 = vld [vmem:[#allocation6 + $0xc] sm:$0xf]
        %v346 = vld [vmem:[#allocation6 + $0x10] sm:$0xf]
        %v347 = vld [vmem:[#allocation6 + $0x14] sm:$0xf]
        %v348 = vld [vmem:[#allocation6 + $0x18] sm:$0xf]
        %v349 = vld [vmem:[#allocation6 + $0x1c] sm:$0xf]
        %v350 = vld [vmem:[%s4] sm:$0x1]
        %v352 = vlaneseq
        %v353 = vshrl.u32 %v352, 7
        %v354 = vsub.s32 0, %v353
        %v355 = vrot.slane %v350, %v354
        %v365 = vunpack.c.l.b16 %v342
        %v366 = vunpack.c.l.b16 %v343
        %v367 = vunpack.c.l.b16 %v344
        %v368 = vunpack.c.l.b16 %v345
        %v369 = vunpack.c.l.b16 %v346
        %v370 = vunpack.c.l.b16 %v347
        %v371 = vunpack.c.l.b16 %v348
        %v372 = vunpack.c.l.b16 %v349
        %v373 = vpack.c.b16 %v366, %v365
        %v374 = vpack.c.b16 %v368, %v367
        %v375 = vpack.c.b16 %v370, %v369
        %v376 = vpack.c.b16 %v372, %v371
        %vm381 = vcmask 523264
        %v383 = vsel %vm381, %v341, 0
        %385 = vmatprep.subr.bf16.mxu0 0
        %386 = vmatpush1.bf16.msra.mxu0 %v373
        %387 = vmatprep.subr.bf16.mxu0 0
        %388 = vmatpush1.bf16.msra.mxu0 %v374
        %389 = vmatprep.subr.bf16.mxu0 0
        %390 = vmatpush1.bf16.msra.mxu0 %v375
        %391 = vmatprep.subr.bf16.mxu0 0
        %392 = vmatpush1.bf16.msra.mxu0 %v376
        %393 = vmatprep.subr.bf16.mxu0 0
        %394 = vmatpush1.bf16.msra.mxu0 0
        %395 = vmatprep.subr.bf16.mxu0 0
        %396 = vmatpush1.bf16.msra.mxu0 0
        %397 = vmatprep.subr.bf16.mxu0 0
        %398 = vmatpush1.bf16.msra.mxu0 0
        %399 = vmatprep.subr.bf16.mxu0 0
        %400 = vmatpush1.bf16.msra.mxu0 0
        %401 = vmatprep.subr.bf16.mxu0 0
        %402 = vmatpush1.bf16.msra.mxu0 0
        %403 = vmatprep.subr.bf16.mxu0 0
        %404 = vmatpush1.bf16.msra.mxu0 0
        %405 = vmatprep.subr.bf16.mxu0 0
        %406 = vmatpush1.bf16.msra.mxu0 0
        %407 = vmatprep.subr.bf16.mxu0 0
        %408 = vmatpush1.bf16.msra.mxu0 0
        %409 = vmatprep.subr.bf16.mxu0 0
        %410 = vmatpush1.bf16.msra.mxu0 0
        %411 = vmatprep.subr.bf16.mxu0 0
        %412 = vmatpush1.bf16.msra.mxu0 0
        %413 = vmatprep.subr.bf16.mxu0 0
        %414 = vmatpush1.bf16.msra.mxu0 0
        %415 = vmatprep.subr.bf16.mxu0 0
        %416 = vmatpush1.bf16.msra.mxu0 0
        %417 = vmatprep.mubr.bf16.mxu0 0
        %418 = vmatmul.mubr.bf16.gmra.mrb[0].mxu0 %v383
        %v419 = vpop.f32.mrb[0].mxu0
        %v420 = vadd.f32 %v355, %v419
        %v421 = vpop.f32.mrb[0].mxu0
        %v422 = vpop.f32.mrb[0].mxu0
        %v423 = vpop.f32.mrb[0].mxu0
        %424 = vdwg.mxu0
        %425 = vmax.xlane.f32.xlu0 %v420
        %v426 = vpop.xlane.xlu0 %425
        %v427 = vsub.f32 %v420, %v426
        %v428 = vmul.f32 %v427, 1.442695
        %v429 = vpow.pop %v428
        %430 = vadd.xlane.f32.xlu0 %v429
        %v431 = vpop.xlane.xlu0 %430
        %v432 = vrcp.pop %v431
        %v433 = vmul.f32 %v429, %v432
        %vm434 = vcmask 31744
        %435 = vst.msk [vmem:[%s268] sm:$0xff] %vm434, %v433
        %p436 = scmp.lt.s32.totalorder %s20, 1
        %s437 = scalar_select %p436, %s20, 1
        %s438 = smul.addr %s437, 8
        %s439 = scalar_lea.vmem %s5, %s438
        // Predicated region
        $region53: #{tpu_custom_call.1} parent=39 // pred_check
          %p440 = pneg %p148
        $region54: #{tpu_custom_call.1} parent=39 // pred_check_branch
          %442 = sbr.rel (%p440) target = $region56
        $region55: #{tpu_custom_call.1} parent=39 // pred_region
          _
        $region56: #{tpu_custom_call.1} parent=39 // pred_fallthru
          _
      $region40: #{tpu_custom_call.1} parent=5 // pred_fallthru
        _
      %p443 = scmp.le.s32.totalorder 2, %s15
      // Predicated region
      $region57: #{tpu_custom_call.1} parent=5 // pred_check
        %p444 = pneg %p443
      $region58: #{tpu_custom_call.1} parent=5 // pred_check_branch
        %446 = sbr.rel (%p444) target = $region60
      $region59: #{tpu_custom_call.1} parent=5 // pred_region
        %s447 = ssub.s32 %s15, 2
        // Predicated region
        $region61: #{tpu_custom_call.1} parent=59 // pred_check
          %p448 = pneg %p154
        $region62: #{tpu_custom_call.1} parent=59 // pred_check_branch
          %450 = sbr.rel (%p448) target = $region64
        $region63: #{tpu_custom_call.1} parent=59 // pred_region
          %p451 = scmp.lt.s32.totalorder %s21, 1
          %s452 = scalar_select %p451, %s21, 1
          %s453 = smul.addr %s452, 8
          %s454 = scalar_lea.vmem %s5, %s453
        $region64: #{tpu_custom_call.1} parent=59 // pred_fallthru
          _
      $region60: #{tpu_custom_call.1} parent=5 // pred_fallthru
        _
    $region6: #{tpu_custom_call.1} parent=1 // loop_footer
      %s19 = sadd.s32 1, %s15
    $region7: #{tpu_custom_call.1} parent=1 // loop_footer_branch
      %14 = sbr.rel target = $region3
    $region8: #{tpu_custom_call.1} parent=1 // loop_exit
      _
    %455 = vsyncpa [#allocation3], 1
    %s456 = scalar_lea.sflag [#allocation3], 1
    %457 = vsyncpa %s456, 1
    %458 = vsyncpa [#allocation5], 1

</llo_original>
